<compile_context>
chip_gen: v5e
topology: v5e:2x2
jax: 0.10.0
libtpu: 0.0.40
codegen_flags: <defaults>
</compile_context>

<pallas_src>
import jax
import jax.numpy as jnp
from jax.experimental import pallas as pl
from jax.experimental.pallas import tpu as pltpu

LN_EPS = 1e-5  # PyTorch nn.LayerNorm default


def _layernorm(v, gamma, beta):
    mu = jnp.mean(v, axis=-1, keepdims=True)
    var = jnp.mean((v - mu) ** 2, axis=-1, keepdims=True)
    return (v - mu) * jax.lax.rsqrt(var + LN_EPS) * gamma + beta


def token_fuser_kernel(x_ref, xo_ref, ln_ref, wp_ref, bp_ref, wct_ref,
                       out_ref, t_ref):
    S = t_ref.shape[0]

    # Token branch (LN1 -> Linear over tokens -> LN2). It only depends on x[b],
    # so compute it once per batch element (first spatial tile) into scratch.
    @pl.when(pl.program_id(1) == 0)
    def _():
        x = x_ref[0].astype(jnp.float32)                               # (S, C)
        xl = _layernorm(x, ln_ref[0], ln_ref[1])
        xp = jnp.dot(wp_ref[...], xl, preferred_element_type=jnp.float32)
        xp = xp + bp_ref[0][:, None]                                   # (S, C)
        t_ref[...] = _layernorm(xp, ln_ref[2], ln_ref[3])

    # Spatial branch for this (TN, C) tile.
    xo = xo_ref[0].astype(jnp.float32)                                 # (TN, C)
    xq = _layernorm(xo, ln_ref[4], ln_ref[5])
    q = jax.nn.sigmoid(
        jnp.dot(xq, wct_ref[...], preferred_element_type=jnp.float32))  # (TN, S)

    # out = q @ t + xo, but K = S is tiny: a lane-dense VPU accumulation over
    # the S tokens avoids a drain-latency-bound K=8 MXU matmul and the
    # lane-sparse (TN, S) result layout.
    t = t_ref[...]                                                     # (S, C)
    out = xo
    for s in range(S):                                                 # static unroll
        out = out + q[:, s:s + 1] * t[s:s + 1, :]
    out_ref[0] = out.astype(out_ref.dtype)


def _pick_tile_n(N, C, in_bytes, out_bytes, budget_bytes):
    """Rows per spatial tile. Budget covers the double-buffered in/out tiles
    plus ~3 f32 (TN, C) intermediates (xo_f32 / xq / out) inside the kernel."""
    per_row = C * (2 * in_bytes + 2 * out_bytes + 3 * 4)
    cap = max(16, budget_bytes // max(per_row, 1))
    if N <= cap:
        return N                         # whole spatial extent in one block
    tn = max(16, (cap // 16) * 16)       # multiple of 16: fine for f32 and bf16
    t = tn
    while t >= 16:                       # prefer an even split (no ragged block)
        if N % t == 0:
            return t
        t -= 16
    return tn                            # ragged last block: OOB writes are masked


def token_fuser(x, x_origin, params, *, vmem_budget_bytes=16 * 1024 * 1024):
    """x: (B, S, C); x_origin: (B, H, W, C); returns (B, H, W, C) in x_origin.dtype."""
    B, S, C = x.shape
    _, H, W, _ = x_origin.shape
    N = H * W
    xo_flat = x_origin.reshape(B, N, C)

    out_dtype = x_origin.dtype
    in_bytes = jnp.dtype(x_origin.dtype).itemsize
    out_bytes = jnp.dtype(out_dtype).itemsize

    TN = _pick_tile_n(N, C, in_bytes, out_bytes, vmem_budget_bytes)
    grid_n = pl.cdiv(N, TN)

    f32 = jnp.float32
    # Pack the six (C,) LayerNorm params into one sublane-aligned (8, C) array:
    # rows 0/1 = ln1 g/b, 2/3 = ln2 g/b, 4/5 = ln_o g/b, 6/7 = padding.
    ln_pack = jnp.stack([
        params["ln1_g"], params["ln1_b"],
        params["ln2_g"], params["ln2_b"],
        params["lno_g"], params["lno_b"],
        jnp.zeros((C,), f32), jnp.zeros((C,), f32)], axis=0).astype(f32)
    wp = params["proj_w"].astype(f32)                 # (S, S)
    bp = params["proj_b"].reshape(1, S).astype(f32)   # (1, S)
    wct = params["conv_w"].T.astype(f32)              # (C, S): plain matmul in-kernel

    full = lambda shape: pl.BlockSpec(shape, lambda b, n: tuple(0 for _ in shape))

    grid_spec = pltpu.PrefetchScalarGridSpec(
        num_scalar_prefetch=0,
        grid=(B, grid_n),
        in_specs=[
            pl.BlockSpec((1, S, C), lambda b, n: (b, 0, 0)),   # x (constant over n)
            pl.BlockSpec((1, TN, C), lambda b, n: (b, n, 0)),  # x_origin spatial tile
            full((8, C)),                                      # packed LN gamma/beta
            full((S, S)),                                      # proj weight
            full((1, S)),                                      # proj bias
            full((C, S)),                                      # conv weight (pre-transposed)
        ],
        out_specs=pl.BlockSpec((1, TN, C), lambda b, n: (b, n, 0)),
        scratch_shapes=[pltpu.VMEM((S, C), jnp.float32)],      # hoisted token tensor t
    )

    cost = pl.CostEstimate(
        flops=int(B * (4 * N * S * C + 2 * S * S * C)),
        transcendentals=int(B * N * S),
        bytes_accessed=int(B * N * C * (in_bytes + out_bytes) + B * S * C * in_bytes),
    )

    out_flat = pl.pallas_call(
        token_fuser_kernel,
        out_shape=jax.ShapeDtypeStruct((B, N, C), out_dtype),
        grid_spec=grid_spec,
        compiler_params=pltpu.CompilerParams(
            dimension_semantics=("parallel", "arbitrary"),
            vmem_limit_bytes=48 * 1024 * 1024),
        cost_estimate=cost,
    )(x, xo_flat, ln_pack, wp, bp, wct)

    return out_flat.reshape(B, H, W, C)


def token_fuser_ref(x, x_origin, params):
    """Pure-JAX reference mirroring the PyTorch forward exactly (f32)."""
    xl = _layernorm(x, params["ln1_g"], params["ln1_b"])                    # (B,S,C)
    xp = jnp.einsum("bsc,ts->btc", xl, params["proj_w"]) + params["proj_b"][None, :, None]
    t = _layernorm(xp, params["ln2_g"], params["ln2_b"])                    # (B,S,C)
    xq = _layernorm(x_origin, params["lno_g"], params["lno_b"])             # (B,H,W,C)
    q = jax.nn.sigmoid(jnp.einsum("bhwc,sc->bshw", xq, params["conv_w"]))   # (B,S,H,W)
    out = jnp.einsum("bshw,bsc->bhwc", q, t) + x_origin
    return out


if __name__ == "__main__":
    B, S, C, H, W = 2, 8, 32, 8, 8  # num_tokens=8, in_channels=32

    key = jax.random.PRNGKey(0)
    keys = jax.random.split(key, 8)
    x = jax.random.normal(keys[0], (B, S, C), jnp.float32)
    x_origin = jax.random.normal(keys[1], (B, H, W, C), jnp.float32)

    # Deterministic synthetic parameters (shapes from TokenFuser.__init__).
    params = {
        "ln1_g": jnp.ones((C,), jnp.float32) + 0.05 * jax.random.normal(keys[2], (C,)),
        "ln1_b": 0.05 * jax.random.normal(keys[3], (C,)),
        "ln2_g": jnp.ones((C,), jnp.float32),
        "ln2_b": jnp.zeros((C,), jnp.float32),
        "lno_g": jnp.ones((C,), jnp.float32),
        "lno_b": jnp.zeros((C,), jnp.float32),
        "proj_w": 0.1 * jax.random.normal(keys[4], (S, S), jnp.float32),
        "proj_b": 0.1 * jax.random.normal(keys[5], (S,), jnp.float32),
        "conv_w": 0.1 * jax.random.normal(keys[6], (S, C), jnp.float32),  # Conv2d(C,S,1,1), no bias
    }

    # f32 path: tight correctness check against the reference.
    out = jax.block_until_ready(token_fuser(x, x_origin, params))
    ref = jax.block_until_ready(token_fuser_ref(x, x_origin, params))
    assert out.shape == (B, H, W, C)
    assert out.dtype == jnp.float32
    assert jnp.allclose(out, ref, atol=1e-4, rtol=1e-4)

    # bf16 storage path (halves HBM traffic; compute stays f32 inside the kernel).
    x_bf = x.astype(jnp.bfloat16)
    xo_bf = x_origin.astype(jnp.bfloat16)
    out_bf = jax.block_until_ready(token_fuser(x_bf, xo_bf, params))
    ref_bf = token_fuser_ref(x_bf.astype(jnp.float32), xo_bf.astype(jnp.float32), params)
    assert out_bf.dtype == jnp.bfloat16
    assert jnp.allclose(out_bf.astype(jnp.float32), ref_bf, atol=0.1, rtol=0.1)

    print("KERNEL_OK")
</pallas_src>

<mosaic_0001>
module attributes {stable_mosaic.version = 11 : i64} {
  func.func @token_fuser_kernel(%arg0: i32, %arg1: i32, %arg2: memref<1x8x32xf32, #tpu.memory_space<vmem>>, %arg3: memref<1x64x32xf32, #tpu.memory_space<vmem>>, %arg4: memref<8x32xf32, #tpu.memory_space<vmem>>, %arg5: memref<8x8xf32, #tpu.memory_space<vmem>>, %arg6: memref<1x8xf32, #tpu.memory_space<vmem>>, %arg7: memref<32x8xf32, #tpu.memory_space<vmem>>, %arg8: memref<1x64x32xf32, #tpu.memory_space<vmem>>, %arg9: memref<8x32xf32, #tpu.memory_space<vmem>>) attributes {dimension_semantics = [#tpu.dimension_semantics<parallel>, #tpu.dimension_semantics<arbitrary>], iteration_bounds = array<i64: 2, 1>, scalar_prefetch = 0 : i64, scratch_operands = 1 : i64, tpu.core_type = #tpu.core_type<tc>, window_params = [{transform_indices = @transform_0, window_bounds = array<i64: 1, 8, 32>}, {transform_indices = @transform_1, window_bounds = array<i64: 1, 64, 32>}, {pipeline_mode = #tpu.pipeline_mode<synchronous>, transform_indices = @transform_2, window_bounds = array<i64: 8, 32>}, {pipeline_mode = #tpu.pipeline_mode<synchronous>, transform_indices = @transform_3, window_bounds = array<i64: 8, 8>}, {pipeline_mode = #tpu.pipeline_mode<synchronous>, transform_indices = @transform_4, window_bounds = array<i64: 1, 8>}, {pipeline_mode = #tpu.pipeline_mode<synchronous>, transform_indices = @transform_5, window_bounds = array<i64: 32, 8>}, {transform_indices = @transform_6, window_bounds = array<i64: 1, 64, 32>}]} {
    %c0_i32 = arith.constant 0 : i32
    %0 = arith.cmpi eq, %arg1, %c0_i32 : i32
    %1 = arith.extui %0 : i1 to i32
    %c0_i32_0 = arith.constant 0 : i32
    %2 = arith.cmpi ne, %1, %c0_i32_0 : i32
    scf.if %2 {
      %c0_18 = arith.constant 0 : index
      %c0_19 = arith.constant 0 : index
      %c0_20 = arith.constant 0 : index
      %92 = vector.load %arg2[%c0_18, %c0_19, %c0_20] : memref<1x8x32xf32, #tpu.memory_space<vmem>>, vector<1x8x32xf32>
      %93 = vector.shape_cast %92 : vector<1x8x32xf32> to vector<8x32xf32>
      %c0_21 = arith.constant 0 : index
      %c0_22 = arith.constant 0 : index
      %94 = vector.load %arg4[%c0_21, %c0_22] : memref<8x32xf32, #tpu.memory_space<vmem>>, vector<1x32xf32>
      %95 = vector.shape_cast %94 : vector<1x32xf32> to vector<32xf32>
      %c1 = arith.constant 1 : index
      %c0_23 = arith.constant 0 : index
      %96 = vector.load %arg4[%c1, %c0_23] : memref<8x32xf32, #tpu.memory_space<vmem>>, vector<1x32xf32>
      %97 = vector.shape_cast %96 : vector<1x32xf32> to vector<32xf32>
      %cst_24 = arith.constant dense<0.000000e+00> : vector<8xf32>
      %98 = vector.multi_reduction <add>, %93, %cst_24 [1] : vector<8x32xf32> to vector<8xf32>
      %99 = vector.shape_cast %98 : vector<8xf32> to vector<8x1xf32>
      %cst_25 = arith.constant 3.200000e+01 : f32
      %100 = vector.broadcast %cst_25 : f32 to vector<8x1xf32>
      %101 = arith.divf %99, %100 : vector<8x1xf32>
      %102 = vector.broadcast %101 : vector<8x1xf32> to vector<8x32xf32>
      %103 = arith.subf %93, %102 : vector<8x32xf32>
      %104 = arith.mulf %103, %103 : vector<8x32xf32>
      %cst_26 = arith.constant dense<0.000000e+00> : vector<8xf32>
      %105 = vector.multi_reduction <add>, %104, %cst_26 [1] : vector<8x32xf32> to vector<8xf32>
      %106 = vector.shape_cast %105 : vector<8xf32> to vector<8x1xf32>
      %cst_27 = arith.constant 3.200000e+01 : f32
      %107 = vector.broadcast %cst_27 : f32 to vector<8x1xf32>
      %108 = arith.divf %106, %107 : vector<8x1xf32>
      %109 = vector.broadcast %101 : vector<8x1xf32> to vector<8x32xf32>
      %110 = arith.subf %93, %109 : vector<8x32xf32>
      %cst_28 = arith.constant 9.99999974E-6 : f32
      %111 = vector.broadcast %cst_28 : f32 to vector<8x1xf32>
      %112 = arith.addf %108, %111 : vector<8x1xf32>
      %113 = math.rsqrt %112 : vector<8x1xf32>
      %114 = vector.broadcast %113 : vector<8x1xf32> to vector<8x32xf32>
      %115 = arith.mulf %110, %114 : vector<8x32xf32>
      %116 = vector.shape_cast %95 : vector<32xf32> to vector<1x32xf32>
      %117 = vector.broadcast %116 : vector<1x32xf32> to vector<8x32xf32>
      %118 = arith.mulf %115, %117 : vector<8x32xf32>
      %119 = vector.shape_cast %97 : vector<32xf32> to vector<1x32xf32>
      %120 = vector.broadcast %119 : vector<1x32xf32> to vector<8x32xf32>
      %121 = arith.addf %118, %120 : vector<8x32xf32>
      %c0_29 = arith.constant 0 : index
      %c0_30 = arith.constant 0 : index
      %122 = vector.load %arg5[%c0_29, %c0_30] : memref<8x8xf32, #tpu.memory_space<vmem>>, vector<8x8xf32>
      %cst_31 = arith.constant dense<0.000000e+00> : vector<8x32xf32>
      %123 = tpu.matmul %122, %121, %cst_31 {dimension_numbers = #tpu.dot_dimension_numbers<[1], [0], [0], [1], [0, 0, 1, 1], [], []>} : vector<8x8xf32>, vector<8x32xf32>, vector<8x32xf32> -> vector<8x32xf32>
      %c0_32 = arith.constant 0 : index
      %c0_33 = arith.constant 0 : index
      %124 = vector.load %arg6[%c0_32, %c0_33] : memref<1x8xf32, #tpu.memory_space<vmem>>, vector<1x8xf32>
      %125 = vector.shape_cast %124 : vector<1x8xf32> to vector<8xf32>
      %126 = vector.shape_cast %125 : vector<8xf32> to vector<8x1xf32>
      %127 = vector.broadcast %126 : vector<8x1xf32> to vector<8x32xf32>
      %128 = arith.addf %123, %127 : vector<8x32xf32>
      %c2 = arith.constant 2 : index
      %c0_34 = arith.constant 0 : index
      %129 = vector.load %arg4[%c2, %c0_34] : memref<8x32xf32, #tpu.memory_space<vmem>>, vector<1x32xf32>
      %130 = vector.shape_cast %129 : vector<1x32xf32> to vector<32xf32>
      %c3 = arith.constant 3 : index
      %c0_35 = arith.constant 0 : index
      %131 = vector.load %arg4[%c3, %c0_35] : memref<8x32xf32, #tpu.memory_space<vmem>>, vector<1x32xf32>
      %132 = vector.shape_cast %131 : vector<1x32xf32> to vector<32xf32>
      %cst_36 = arith.constant dense<0.000000e+00> : vector<8xf32>
      %133 = vector.multi_reduction <add>, %128, %cst_36 [1] : vector<8x32xf32> to vector<8xf32>
      %134 = vector.shape_cast %133 : vector<8xf32> to vector<8x1xf32>
      %cst_37 = arith.constant 3.200000e+01 : f32
      %135 = vector.broadcast %cst_37 : f32 to vector<8x1xf32>
      %136 = arith.divf %134, %135 : vector<8x1xf32>
      %137 = vector.broadcast %136 : vector<8x1xf32> to vector<8x32xf32>
      %138 = arith.subf %128, %137 : vector<8x32xf32>
      %139 = arith.mulf %138, %138 : vector<8x32xf32>
      %cst_38 = arith.constant dense<0.000000e+00> : vector<8xf32>
      %140 = vector.multi_reduction <add>, %139, %cst_38 [1] : vector<8x32xf32> to vector<8xf32>
      %141 = vector.shape_cast %140 : vector<8xf32> to vector<8x1xf32>
      %cst_39 = arith.constant 3.200000e+01 : f32
      %142 = vector.broadcast %cst_39 : f32 to vector<8x1xf32>
      %143 = arith.divf %141, %142 : vector<8x1xf32>
      %144 = vector.broadcast %136 : vector<8x1xf32> to vector<8x32xf32>
      %145 = arith.subf %128, %144 : vector<8x32xf32>
      %cst_40 = arith.constant 9.99999974E-6 : f32
      %146 = vector.broadcast %cst_40 : f32 to vector<8x1xf32>
      %147 = arith.addf %143, %146 : vector<8x1xf32>
      %148 = math.rsqrt %147 : vector<8x1xf32>
      %149 = vector.broadcast %148 : vector<8x1xf32> to vector<8x32xf32>
      %150 = arith.mulf %145, %149 : vector<8x32xf32>
      %151 = vector.shape_cast %130 : vector<32xf32> to vector<1x32xf32>
      %152 = vector.broadcast %151 : vector<1x32xf32> to vector<8x32xf32>
      %153 = arith.mulf %150, %152 : vector<8x32xf32>
      %154 = vector.shape_cast %132 : vector<32xf32> to vector<1x32xf32>
      %155 = vector.broadcast %154 : vector<1x32xf32> to vector<8x32xf32>
      %156 = arith.addf %153, %155 : vector<8x32xf32>
      %c0_41 = arith.constant 0 : index
      %c0_42 = arith.constant 0 : index
      %157 = vector.load %arg9[%c0_41, %c0_42] : memref<8x32xf32, #tpu.memory_space<vmem>>, vector<8x32xf32>
      tpu.vector_store %arg9[%c0_41, %c0_42], %156 {strides = array<i32>} : memref<8x32xf32, #tpu.memory_space<vmem>>, vector<8x32xf32>,
    } else {
    }
    %c0 = arith.constant 0 : index
    %c0_1 = arith.constant 0 : index
    %c0_2 = arith.constant 0 : index
    %3 = vector.load %arg3[%c0, %c0_1, %c0_2] : memref<1x64x32xf32, #tpu.memory_space<vmem>>, vector<1x64x32xf32>
    %4 = vector.shape_cast %3 : vector<1x64x32xf32> to vector<64x32xf32>
    %c4 = arith.constant 4 : index
    %c0_3 = arith.constant 0 : index
    %5 = vector.load %arg4[%c4, %c0_3] : memref<8x32xf32, #tpu.memory_space<vmem>>, vector<1x32xf32>
    %6 = vector.shape_cast %5 : vector<1x32xf32> to vector<32xf32>
    %c5 = arith.constant 5 : index
    %c0_4 = arith.constant 0 : index
    %7 = vector.load %arg4[%c5, %c0_4] : memref<8x32xf32, #tpu.memory_space<vmem>>, vector<1x32xf32>
    %8 = vector.shape_cast %7 : vector<1x32xf32> to vector<32xf32>
    %cst = arith.constant dense<0.000000e+00> : vector<64xf32>
    %9 = vector.multi_reduction <add>, %4, %cst [1] : vector<64x32xf32> to vector<64xf32>
    %10 = vector.shape_cast %9 : vector<64xf32> to vector<64x1xf32>
    %cst_5 = arith.constant 3.200000e+01 : f32
    %11 = vector.broadcast %cst_5 : f32 to vector<64x1xf32>
    %12 = arith.divf %10, %11 : vector<64x1xf32>
    %13 = vector.broadcast %12 : vector<64x1xf32> to vector<64x32xf32>
    %14 = arith.subf %4, %13 : vector<64x32xf32>
    %15 = arith.mulf %14, %14 : vector<64x32xf32>
    %cst_6 = arith.constant dense<0.000000e+00> : vector<64xf32>
    %16 = vector.multi_reduction <add>, %15, %cst_6 [1] : vector<64x32xf32> to vector<64xf32>
    %17 = vector.shape_cast %16 : vector<64xf32> to vector<64x1xf32>
    %cst_7 = arith.constant 3.200000e+01 : f32
    %18 = vector.broadcast %cst_7 : f32 to vector<64x1xf32>
    %19 = arith.divf %17, %18 : vector<64x1xf32>
    %20 = vector.broadcast %12 : vector<64x1xf32> to vector<64x32xf32>
    %21 = arith.subf %4, %20 : vector<64x32xf32>
    %cst_8 = arith.constant 9.99999974E-6 : f32
    %22 = vector.broadcast %cst_8 : f32 to vector<64x1xf32>
    %23 = arith.addf %19, %22 : vector<64x1xf32>
    %24 = math.rsqrt %23 : vector<64x1xf32>
    %25 = vector.broadcast %24 : vector<64x1xf32> to vector<64x32xf32>
    %26 = arith.mulf %21, %25 : vector<64x32xf32>
    %27 = vector.shape_cast %6 : vector<32xf32> to vector<1x32xf32>
    %28 = vector.broadcast %27 : vector<1x32xf32> to vector<64x32xf32>
    %29 = arith.mulf %26, %28 : vector<64x32xf32>
    %30 = vector.shape_cast %8 : vector<32xf32> to vector<1x32xf32>
    %31 = vector.broadcast %30 : vector<1x32xf32> to vector<64x32xf32>
    %32 = arith.addf %29, %31 : vector<64x32xf32>
    %c0_9 = arith.constant 0 : index
    %c0_10 = arith.constant 0 : index
    %33 = vector.load %arg7[%c0_9, %c0_10] : memref<32x8xf32, #tpu.memory_space<vmem>>, vector<32x8xf32>
    %cst_11 = arith.constant dense<0.000000e+00> : vector<64x8xf32>
    %34 = tpu.matmul %32, %33, %cst_11 {dimension_numbers = #tpu.dot_dimension_numbers<[1], [0], [0], [1], [0, 0, 1, 1], [], []>} : vector<64x32xf32>, vector<32x8xf32>, vector<64x8xf32> -> vector<64x8xf32>
    %35 = arith.negf %34 : vector<64x8xf32>
    %36 = math.exp %35 : vector<64x8xf32>
    %cst_12 = arith.constant 1.000000e+00 : f32
    %37 = vector.broadcast %cst_12 : f32 to vector<64x8xf32>
    %38 = arith.addf %37, %36 : vector<64x8xf32>
    %39 = arith.divf %37, %38 : vector<64x8xf32>
    %c0_13 = arith.constant 0 : index
    %c0_14 = arith.constant 0 : index
    %40 = vector.load %arg9[%c0_13, %c0_14] : memref<8x32xf32, #tpu.memory_space<vmem>>, vector<8x32xf32>
    %41 = vector.extract_strided_slice %39 {offsets = [0, 0], sizes = [64, 1], strides = [1, 1]} : vector<64x8xf32> to vector<64x1xf32>
    %42 = vector.extract_strided_slice %40 {offsets = [0, 0], sizes = [1, 32], strides = [1, 1]} : vector<8x32xf32> to vector<1x32xf32>
    %43 = vector.broadcast %41 : vector<64x1xf32> to vector<64x32xf32>
    %44 = vector.broadcast %42 : vector<1x32xf32> to vector<64x32xf32>
    %45 = arith.mulf %43, %44 : vector<64x32xf32>
    %46 = arith.addf %4, %45 : vector<64x32xf32>
    %47 = vector.extract_strided_slice %39 {offsets = [0, 1], sizes = [64, 1], strides = [1, 1]} : vector<64x8xf32> to vector<64x1xf32>
    %48 = vector.extract_strided_slice %40 {offsets = [1, 0], sizes = [1, 32], strides = [1, 1]} : vector<8x32xf32> to vector<1x32xf32>
    %49 = vector.broadcast %47 : vector<64x1xf32> to vector<64x32xf32>
    %50 = vector.broadcast %48 : vector<1x32xf32> to vector<64x32xf32>
    %51 = arith.mulf %49, %50 : vector<64x32xf32>
    %52 = arith.addf %46, %51 : vector<64x32xf32>
    %53 = vector.extract_strided_slice %39 {offsets = [0, 2], sizes = [64, 1], strides = [1, 1]} : vector<64x8xf32> to vector<64x1xf32>
    %54 = vector.extract_strided_slice %40 {offsets = [2, 0], sizes = [1, 32], strides = [1, 1]} : vector<8x32xf32> to vector<1x32xf32>
    %55 = vector.broadcast %53 : vector<64x1xf32> to vector<64x32xf32>
    %56 = vector.broadcast %54 : vector<1x32xf32> to vector<64x32xf32>
    %57 = arith.mulf %55, %56 : vector<64x32xf32>
    %58 = arith.addf %52, %57 : vector<64x32xf32>
    %59 = vector.extract_strided_slice %39 {offsets = [0, 3], sizes = [64, 1], strides = [1, 1]} : vector<64x8xf32> to vector<64x1xf32>
    %60 = vector.extract_strided_slice %40 {offsets = [3, 0], sizes = [1, 32], strides = [1, 1]} : vector<8x32xf32> to vector<1x32xf32>
    %61 = vector.broadcast %59 : vector<64x1xf32> to vector<64x32xf32>
    %62 = vector.broadcast %60 : vector<1x32xf32> to vector<64x32xf32>
    %63 = arith.mulf %61, %62 : vector<64x32xf32>
    %64 = arith.addf %58, %63 : vector<64x32xf32>
    %65 = vector.extract_strided_slice %39 {offsets = [0, 4], sizes = [64, 1], strides = [1, 1]} : vector<64x8xf32> to vector<64x1xf32>
    %66 = vector.extract_strided_slice %40 {offsets = [4, 0], sizes = [1, 32], strides = [1, 1]} : vector<8x32xf32> to vector<1x32xf32>
    %67 = vector.broadcast %65 : vector<64x1xf32> to vector<64x32xf32>
    %68 = vector.broadcast %66 : vector<1x32xf32> to vector<64x32xf32>
    %69 = arith.mulf %67, %68 : vector<64x32xf32>
    %70 = arith.addf %64, %69 : vector<64x32xf32>
    %71 = vector.extract_strided_slice %39 {offsets = [0, 5], sizes = [64, 1], strides = [1, 1]} : vector<64x8xf32> to vector<64x1xf32>
    %72 = vector.extract_strided_slice %40 {offsets = [5, 0], sizes = [1, 32], strides = [1, 1]} : vector<8x32xf32> to vector<1x32xf32>
    %73 = vector.broadcast %71 : vector<64x1xf32> to vector<64x32xf32>
    %74 = vector.broadcast %72 : vector<1x32xf32> to vector<64x32xf32>
    %75 = arith.mulf %73, %74 : vector<64x32xf32>
    %76 = arith.addf %70, %75 : vector<64x32xf32>
    %77 = vector.extract_strided_slice %39 {offsets = [0, 6], sizes = [64, 1], strides = [1, 1]} : vector<64x8xf32> to vector<64x1xf32>
    %78 = vector.extract_strided_slice %40 {offsets = [6, 0], sizes = [1, 32], strides = [1, 1]} : vector<8x32xf32> to vector<1x32xf32>
    %79 = vector.broadcast %77 : vector<64x1xf32> to vector<64x32xf32>
    %80 = vector.broadcast %78 : vector<1x32xf32> to vector<64x32xf32>
    %81 = arith.mulf %79, %80 : vector<64x32xf32>
    %82 = arith.addf %76, %81 : vector<64x32xf32>
    %83 = vector.extract_strided_slice %39 {offsets = [0, 7], sizes = [64, 1], strides = [1, 1]} : vector<64x8xf32> to vector<64x1xf32>
    %84 = vector.extract_strided_slice %40 {offsets = [7, 0], sizes = [1, 32], strides = [1, 1]} : vector<8x32xf32> to vector<1x32xf32>
    %85 = vector.broadcast %83 : vector<64x1xf32> to vector<64x32xf32>
    %86 = vector.broadcast %84 : vector<1x32xf32> to vector<64x32xf32>
    %87 = arith.mulf %85, %86 : vector<64x32xf32>
    %88 = arith.addf %82, %87 : vector<64x32xf32>
    %c0_15 = arith.constant 0 : index
    %c0_16 = arith.constant 0 : index
    %c0_17 = arith.constant 0 : index
    %89 = vector.load %arg8[%c0_15, %c0_16, %c0_17] : memref<1x64x32xf32, #tpu.memory_space<vmem>>, vector<1x64x32xf32>
    %90 = vector.shape_cast %89 : vector<1x64x32xf32> to vector<64x32xf32>
    %91 = vector.shape_cast %88 : vector<64x32xf32> to vector<1x64x32xf32>
    tpu.vector_store %arg8[%c0_15, %c0_16, %c0_17], %91 {strides = array<i32>} : memref<1x64x32xf32, #tpu.memory_space<vmem>>, vector<1x64x32xf32>,
    return
  }
  func.func @transform_0(%arg0: i32, %arg1: i32) -> (i32, i32, i32) {
    %c0_i32 = arith.constant 0 : i32
    %c0_i32_0 = arith.constant 0 : i32
    %c0_i32_1 = arith.constant 0 : i32
    return %arg0, %c0_i32, %c0_i32_0 : i32, i32, i32
  }
  func.func @transform_1(%arg0: i32, %arg1: i32) -> (i32, i32, i32) {
    %c0_i32 = arith.constant 0 : i32
    %c0_i32_0 = arith.constant 0 : i32
    return %arg0, %arg1, %c0_i32 : i32, i32, i32
  }
  func.func @transform_2(%arg0: i32, %arg1: i32) -> (i32, i32) {
    %c0_i32 = arith.constant 0 : i32
    %c0_i32_0 = arith.constant 0 : i32
    %c0_i32_1 = arith.constant 0 : i32
    return %c0_i32, %c0_i32_0 : i32, i32
  }
  func.func @transform_3(%arg0: i32, %arg1: i32) -> (i32, i32) {
    %c0_i32 = arith.constant 0 : i32
    %c0_i32_0 = arith.constant 0 : i32
    %c0_i32_1 = arith.constant 0 : i32
    return %c0_i32, %c0_i32_0 : i32, i32
  }
  func.func @transform_4(%arg0: i32, %arg1: i32) -> (i32, i32) {
    %c0_i32 = arith.constant 0 : i32
    %c0_i32_0 = arith.constant 0 : i32
    %c0_i32_1 = arith.constant 0 : i32
    return %c0_i32, %c0_i32_0 : i32, i32
  }
  func.func @transform_5(%arg0: i32, %arg1: i32) -> (i32, i32) {
    %c0_i32 = arith.constant 0 : i32
    %c0_i32_0 = arith.constant 0 : i32
    %c0_i32_1 = arith.constant 0 : i32
    return %c0_i32, %c0_i32_0 : i32, i32
  }
  func.func @transform_6(%arg0: i32, %arg1: i32) -> (i32, i32, i32) {
    %c0_i32 = arith.constant 0 : i32
    %c0_i32_0 = arith.constant 0 : i32
    return %arg0, %arg1, %c0_i32 : i32, i32, i32
  }
}

</mosaic_0001>

<llo_original>
// kernel: tpu_custom_call.1
$region0: #{tpu_custom_call.1}
  #allocation0 [shape = 'u32[]', space=smem, size = 0x4, offset = 0x4, fixed_abs, tag = 'smem constant byte address 0x4 - core index']
  #allocation1 [shape = 'u32[72,128]{1,0:T(1,128)}', space=vmem, size = 0x9000, scoped, tag = 'internal scratch']
  #allocation2 [shape = 'f32[8,32]{1,0:T(8,128)}', space=vmem, size = 0x1000, scoped, tag = 'scratch operand']
  %s0 = inlined_call_operand.vmem [shape: f32[2,8,32], index: 0, kind: input, shape index: {}]
  %s1 = inlined_call_operand.vmem [shape: f32[2,64,32], index: 1, kind: input, shape index: {}]
  %s2 = inlined_call_operand.vmem [shape: f32[8,32], index: 2, kind: input, shape index: {}]
  %s3 = inlined_call_operand.vmem [shape: f32[8,8], index: 3, kind: input, shape index: {}]
  %s4 = inlined_call_operand.vmem [shape: f32[1,8], index: 4, kind: input, shape index: {}]
  %s5 = inlined_call_operand.vmem [shape: f32[32,8], index: 5, kind: input, shape index: {}]
  %s6 = inlined_call_operand.vmem [shape: f32[2,64,32], index: 6, kind: output, shape index: {}]
  %s7 = sld [smem:[#allocation0]]
  $region61: #{tpu_custom_call.1} parent=0
    _
  %s9 = ssub.s32 1, %s7
  %s10 = scalar_select 0, %s9, %s7
  loop: start=0, step=1, limit=4
  $region2: #{tpu_custom_call.1} parent=0 // loop_pre_header
    _
  $region3: #{tpu_custom_call.1} parent=0 // loop_header
    %s12 = sphi 0, %s16
    %p13 = scmp.ge.s32.totalorder %s12, 4
    %s19 = sphi 0, %s31
    %s20 = sphi 0, %s27
    %s21 = sphi 0, %s19
    %s22 = sphi 0, %s20
    %s23 = sphi 0, %s21
    %s24 = sphi 0, %s22
    %s34 = sphi 0, %s36
    %s37 = sphi 0, %s34
    %s38 = sphi 0, %s37
    %s54 = sphi 0, %s38
    %s62 = sphi 0, %s64
    %s65 = sphi 0, %s62
    %s66 = sphi 0, %s65
    %s82 = sphi 0, %s66
    %s86 = sphi 0, %s86
    %s88 = sphi 0, %s86
    %s89 = sphi 0, %s88
    %s103 = sphi 0, %s89
    %s107 = sphi 0, %s107
    %s109 = sphi 0, %s107
    %s110 = sphi 0, %s109
    %s124 = sphi 0, %s110
    %s128 = sphi 0, %s128
    %s130 = sphi 0, %s128
    %s131 = sphi 0, %s130
    %s145 = sphi 0, %s131
    %s149 = sphi 0, %s149
    %s151 = sphi 0, %s149
    %s152 = sphi 0, %s151
    %s166 = sphi 0, %s152
    %s174 = sphi 0, %s176
    %s177 = sphi 0, %s174
    %s178 = sphi 0, %s177
    %s194 = sphi 0, %s178
  $region4: #{tpu_custom_call.1} parent=0 // loop_header_branch
    %15 = sbr.rel (%p13) target = $region8
  $region5: #{tpu_custom_call.1} parent=0 // loop_body
    %s17 = ssub.s32 %s12, 1
    %s18 = ssub.s32 %s12, 2
    %s25 = sadd.s32 1, %s20
    %p26 = scmp.ge.s32.totalorder %s25, 1
    %s27 = scalar_select %p26, 0, %s25
    %s28 = sadd.s32 1, %s19
    %s29 = scalar_select %p26, %s28, %s19
    %p30 = scmp.ge.s32.totalorder %s29, 2
    %s31 = scalar_select %p30, 0, %s29
    %s32 = ssub.s32 %s19, %s31
    %p33 = scmp.eq.s32.totalorder %s32, 0
    %s35 = sadd.s32 %s34, 1
    %s36 = scalar_select %p33, %s34, %s35
    %p39 = pneg %p33
    %p40 = scmp.eq.s32.totalorder %s12, 1
    %p41 = por %p39, %p40
    %p42 = scmp.ne.s32.totalorder %s34, %s37
    %p43 = scmp.eq.s32.totalorder %s12, 0
    %p44 = por %p42, %p43
    %p45 = scmp.ne.s32.totalorder %s34, %s37
    %p46 = scmp.eq.s32.totalorder %s17, 1
    %p47 = por %p45, %p46
    %p48 = scmp.ne.s32.totalorder %s37, %s38
    %p49 = scmp.eq.s32.totalorder %s17, 0
    %p50 = por %p48, %p49
    %p51 = scmp.ne.s32.totalorder %s37, %s38
    %p52 = scmp.eq.s32.totalorder %s18, 1
    %p53 = por %p51, %p52
    %p55 = scmp.ne.s32.totalorder %s38, %s54
    %p56 = scmp.eq.s32.totalorder %s18, 0
    %p57 = por %p55, %p56
    %s58 = ssub.s32 %s19, %s31
    %s59 = ssub.s32 %s20, %s27
    %s60 = sor.u32 %s58, %s59
    %p61 = scmp.eq.s32.totalorder %s60, 0
    %s63 = sadd.s32 %s62, 1
    %s64 = scalar_select %p61, %s62, %s63
    %p67 = pneg %p61
    %p68 = scmp.eq.s32.totalorder %s12, 1
    %p69 = por %p67, %p68
    %p70 = scmp.ne.s32.totalorder %s62, %s65
    %p71 = scmp.eq.s32.totalorder %s12, 0
    %p72 = por %p70, %p71
    %p73 = scmp.ne.s32.totalorder %s62, %s65
    %p74 = scmp.eq.s32.totalorder %s17, 1
    %p75 = por %p73, %p74
    %p76 = scmp.ne.s32.totalorder %s65, %s66
    %p77 = scmp.eq.s32.totalorder %s17, 0
    %p78 = por %p76, %p77
    %p79 = scmp.ne.s32.totalorder %s65, %s66
    %p80 = scmp.eq.s32.totalorder %s18, 1
    %p81 = por %p79, %p80
    %p83 = scmp.ne.s32.totalorder %s66, %s82
    %p84 = scmp.eq.s32.totalorder %s18, 0
    %p85 = por %p83, %p84
    %s87 = sadd.s32 %s86, 1
    %p90 = scmp.eq.s32.totalorder %s12, 1
    %p91 = scmp.ne.s32.totalorder %s86, %s88
    %p92 = scmp.eq.s32.totalorder %s12, 0
    %p93 = por %p91, %p92
    %p94 = scmp.ne.s32.totalorder %s86, %s88
    %p95 = scmp.eq.s32.totalorder %s17, 1
    %p96 = por %p94, %p95
    %p97 = scmp.ne.s32.totalorder %s88, %s89
    %p98 = scmp.eq.s32.totalorder %s17, 0
    %p99 = por %p97, %p98
    %p100 = scmp.ne.s32.totalorder %s88, %s89
    %p101 = scmp.eq.s32.totalorder %s18, 1
    %p102 = por %p100, %p101
    %p104 = scmp.ne.s32.totalorder %s89, %s103
    %p105 = scmp.eq.s32.totalorder %s18, 0
    %p106 = por %p104, %p105
    %s108 = sadd.s32 %s107, 1
    %p111 = scmp.eq.s32.totalorder %s12, 1
    %p112 = scmp.ne.s32.totalorder %s107, %s109
    %p113 = scmp.eq.s32.totalorder %s12, 0
    %p114 = por %p112, %p113
    %p115 = scmp.ne.s32.totalorder %s107, %s109
    %p116 = scmp.eq.s32.totalorder %s17, 1
    %p117 = por %p115, %p116
    %p118 = scmp.ne.s32.totalorder %s109, %s110
    %p119 = scmp.eq.s32.totalorder %s17, 0
    %p120 = por %p118, %p119
    %p121 = scmp.ne.s32.totalorder %s109, %s110
    %p122 = scmp.eq.s32.totalorder %s18, 1
    %p123 = por %p121, %p122
    %p125 = scmp.ne.s32.totalorder %s110, %s124
    %p126 = scmp.eq.s32.totalorder %s18, 0
    %p127 = por %p125, %p126
    %s129 = sadd.s32 %s128, 1
    %p132 = scmp.eq.s32.totalorder %s12, 1
    %p133 = scmp.ne.s32.totalorder %s128, %s130
    %p134 = scmp.eq.s32.totalorder %s12, 0
    %p135 = por %p133, %p134
    %p136 = scmp.ne.s32.totalorder %s128, %s130
    %p137 = scmp.eq.s32.totalorder %s17, 1
    %p138 = por %p136, %p137
    %p139 = scmp.ne.s32.totalorder %s130, %s131
    %p140 = scmp.eq.s32.totalorder %s17, 0
    %p141 = por %p139, %p140
    %p142 = scmp.ne.s32.totalorder %s130, %s131
    %p143 = scmp.eq.s32.totalorder %s18, 1
    %p144 = por %p142, %p143
    %p146 = scmp.ne.s32.totalorder %s131, %s145
    %p147 = scmp.eq.s32.totalorder %s18, 0
    %p148 = por %p146, %p147
    %s150 = sadd.s32 %s149, 1
    %p153 = scmp.eq.s32.totalorder %s12, 1
    %p154 = scmp.ne.s32.totalorder %s149, %s151
    %p155 = scmp.eq.s32.totalorder %s12, 0
    %p156 = por %p154, %p155
    %p157 = scmp.ne.s32.totalorder %s149, %s151
    %p158 = scmp.eq.s32.totalorder %s17, 1
    %p159 = por %p157, %p158
    %p160 = scmp.ne.s32.totalorder %s151, %s152
    %p161 = scmp.eq.s32.totalorder %s17, 0
    %p162 = por %p160, %p161
    %p163 = scmp.ne.s32.totalorder %s151, %s152
    %p164 = scmp.eq.s32.totalorder %s18, 1
    %p165 = por %p163, %p164
    %p167 = scmp.ne.s32.totalorder %s152, %s166
    %p168 = scmp.eq.s32.totalorder %s18, 0
    %p169 = por %p167, %p168
    %s170 = ssub.s32 %s19, %s31
    %s171 = ssub.s32 %s20, %s27
    %s172 = sor.u32 %s170, %s171
    %p173 = scmp.eq.s32.totalorder %s172, 0
    %s175 = sadd.s32 %s174, 1
    %s176 = scalar_select %p173, %s174, %s175
    %p179 = pneg %p173
    %p180 = scmp.eq.s32.totalorder %s12, 1
    %p181 = por %p179, %p180
    %p182 = scmp.ne.s32.totalorder %s174, %s177
    %p183 = scmp.eq.s32.totalorder %s12, 0
    %p184 = por %p182, %p183
    %p185 = scmp.ne.s32.totalorder %s174, %s177
    %p186 = scmp.eq.s32.totalorder %s17, 1
    %p187 = por %p185, %p186
    %p188 = scmp.ne.s32.totalorder %s177, %s178
    %p189 = scmp.eq.s32.totalorder %s17, 0
    %p190 = por %p188, %p189
    %p191 = scmp.ne.s32.totalorder %s177, %s178
    %p192 = scmp.eq.s32.totalorder %s18, 1
    %p193 = por %p191, %p192
    %p195 = scmp.ne.s32.totalorder %s178, %s194
    %p196 = scmp.eq.s32.totalorder %s18, 0
    %p197 = por %p195, %p196
    %p198 = scmp.le.s32.totalorder 1, %s12
    %p199 = scmp.lt.s32.totalorder %s12, 3
    %p200 = pnand %p198, %p199
    %p201 = pneg %p200
    // Predicated region
    $region9: #{tpu_custom_call.1} parent=5 // pred_check
      _
    $region10: #{tpu_custom_call.1} parent=5 // pred_check_branch
      %203 = sbr.rel (%p200) target = $region12
    $region11: #{tpu_custom_call.1} parent=5 // pred_region
      %s204 = ssub.s32 %s12, 1
      // Predicated region
      $region13: #{tpu_custom_call.1} parent=11 // pred_check
        %p205 = pneg %p99
      $region14: #{tpu_custom_call.1} parent=11 // pred_check_branch
        %207 = sbr.rel (%p205) target = $region16
      $region15: #{tpu_custom_call.1} parent=11 // pred_region
        _
      $region16: #{tpu_custom_call.1} parent=11 // pred_fallthru
        _
      // Predicated region
      $region17: #{tpu_custom_call.1} parent=11 // pred_check
        %p208 = pneg %p120
      $region18: #{tpu_custom_call.1} parent=11 // pred_check_branch
        %210 = sbr.rel (%p208) target = $region20
      $region19: #{tpu_custom_call.1} parent=11 // pred_region
        _
      $region20: #{tpu_custom_call.1} parent=11 // pred_fallthru
        _
      // Predicated region
      $region21: #{tpu_custom_call.1} parent=11 // pred_check
        %p211 = pneg %p141
      $region22: #{tpu_custom_call.1} parent=11 // pred_check_branch
        %213 = sbr.rel (%p211) target = $region24
      $region23: #{tpu_custom_call.1} parent=11 // pred_region
        _
      $region24: #{tpu_custom_call.1} parent=11 // pred_fallthru
        _
      // Predicated region
      $region25: #{tpu_custom_call.1} parent=11 // pred_check
        %p214 = pneg %p162
      $region26: #{tpu_custom_call.1} parent=11 // pred_check_branch
        %216 = sbr.rel (%p214) target = $region28
      $region27: #{tpu_custom_call.1} parent=11 // pred_region
        _
      $region28: #{tpu_custom_call.1} parent=11 // pred_fallthru
        _
    $region12: #{tpu_custom_call.1} parent=5 // pred_fallthru
      _
    %p217 = scmp.lt.s32.totalorder %s12, 2
    // Predicated region
    $region29: #{tpu_custom_call.1} parent=5 // pred_check
      %p218 = pneg %p217
    $region30: #{tpu_custom_call.1} parent=5 // pred_check_branch
      %220 = sbr.rel (%p218) target = $region32
    $region31: #{tpu_custom_call.1} parent=5 // pred_region
      // Predicated region
      $region33: #{tpu_custom_call.1} parent=31 // pred_check
        %p221 = pneg %p44
      $region34: #{tpu_custom_call.1} parent=31 // pred_check_branch
        %223 = sbr.rel (%p221) target = $region36
      $region35: #{tpu_custom_call.1} parent=31 // pred_region
        %p224 = scmp.lt.s32.totalorder %s19, 1
        %s225 = scalar_select %p224, %s19, 1
        %s226 = smul.addr %s225, 8
        %s227 = scalar_lea.vmem %s0, %s226
      $region36: #{tpu_custom_call.1} parent=31 // pred_fallthru
        _
      // Predicated region
      $region37: #{tpu_custom_call.1} parent=31 // pred_check
        %p228 = pneg %p72
      $region38: #{tpu_custom_call.1} parent=31 // pred_check_branch
        %230 = sbr.rel (%p228) target = $region40
      $region39: #{tpu_custom_call.1} parent=31 // pred_region
        %s231 = smul.u32 8, %s20
        %p232 = scmp.lt.s32.totalorder %s19, 1
        %s233 = scalar_select %p232, %s19, 1
        %p234 = scmp.lt.s32.totalorder %s231, 7
        %s235 = scalar_select %p234, %s231, 7
        %s236 = smul.addr %s233, 8
        %s237 = sadd.s32 %s235, %s236
        %s238 = smul.addr %s237, 8
        %s239 = scalar_lea.vmem %s1, %s238
        %s240 = smul.u32 8, %s20
      $region40: #{tpu_custom_call.1} parent=31 // pred_fallthru
        _
    $region32: #{tpu_custom_call.1} parent=5 // pred_fallthru
      _
    %p241 = scmp.le.s32.totalorder 1, %s12
    %p242 = scmp.lt.s32.totalorder %s12, 3
    %p243 = pnand %p241, %p242
    %p244 = pneg %p243
    // Predicated region
    $region41: #{tpu_custom_call.1} parent=5 // pred_check
      _
    $region42: #{tpu_custom_call.1} parent=5 // pred_check_branch
      %246 = sbr.rel (%p243) target = $region44
    $region43: #{tpu_custom_call.1} parent=5 // pred_region
      %s247 = ssub.s32 %s12, 1
      %p248 = scmp.lt.s32.totalorder %s21, 1
      %s249 = scalar_select %p248, %s21, 1
      %s250 = smul.addr %s249, 8
      %s251 = scalar_lea.vmem %s0, %s250
      %p252 = pneg %p50
      %p253 = pneg %p47
      %s254 = smul.u32 8, %s22
      %p255 = scmp.lt.s32.totalorder %s21, 1
      %s256 = scalar_select %p255, %s21, 1
      %p257 = scmp.lt.s32.totalorder %s254, 7
      %s258 = scalar_select %p257, %s254, 7
      %s259 = smul.addr %s256, 8
      %s260 = sadd.s32 %s258, %s259
      %s261 = smul.addr %s260, 8
      %s262 = scalar_lea.vmem %s1, %s261
      %p263 = pneg %p78
      %p264 = pneg %p75
      %p265 = pneg %p99
      %p266 = pneg %p96
      %p267 = pneg %p120
      %p268 = pneg %p117
      %p269 = pneg %p141
      %p270 = pneg %p138
      %p271 = pneg %p162
      %p272 = pneg %p159
      %p273 = pneg %p190
      %p274 = pneg %p187
      %s275 = smul.u32 8, %s22
      %p276 = scmp.lt.s32.totalorder %s21, 1
      %s277 = scalar_select %p276, %s21, 1
      %p278 = scmp.lt.s32.totalorder %s275, 7
      %s279 = scalar_select %p278, %s275, 7
      %s280 = smul.addr %s277, 8
      %s281 = sadd.s32 %s279, %s280
      %s282 = smul.addr %s281, 8
      %s283 = scalar_lea.vmem %s6, %s282
      %p284 = scmp.lt.s32.totalorder %s21, 1
      %s285 = scalar_select %p284, %s21, 1
      %s286 = smul.addr %s285, 8
      %s287 = scalar_lea.vmem %s0, %s286
      %s288 = smul.u32 8, %s22
      %p289 = scmp.lt.s32.totalorder %s21, 1
      %s290 = scalar_select %p289, %s21, 1
      %p291 = scmp.lt.s32.totalorder %s288, 7
      %s292 = scalar_select %p291, %s288, 7
      %s293 = smul.addr %s290, 8
      %s294 = sadd.s32 %s292, %s293
      %s295 = smul.addr %s294, 8
      %s296 = scalar_lea.vmem %s1, %s295
      %s297 = smul.u32 8, %s22
      %s298 = smul.u32 8, %s22
      %p299 = scmp.lt.s32.totalorder %s21, 1
      %s300 = scalar_select %p299, %s21, 1
      %p301 = scmp.lt.s32.totalorder %s298, 7
      %s302 = scalar_select %p301, %s298, 7
      %s303 = smul.addr %s300, 8
      %s304 = sadd.s32 %s302, %s303
      %s305 = smul.addr %s304, 8
      %s306 = scalar_lea.vmem %s6, %s305
      %s307 = smul.u32 8, %s22
      %p308 = scmp.eq.s32.totalorder %s22, 0
      // Predicated region
      $region45: #{tpu_custom_call.1} parent=43 // pred_check
        %p309 = pneg %p308
      $region46: #{tpu_custom_call.1} parent=43 // pred_check_branch
        %311 = sbr.rel (%p309) target = $region48
      $region47: #{tpu_custom_call.1} parent=43 // pred_region
        %v312 = vld [vmem:[%s287] sm:$0xff]
        %v313 = vld [vmem:[%s2] sm:$0x1]
        %v314 = vld [vmem:[%s2 + $0x1] sm:$0x1]
        %vm315 = vcmask 261120
        %v316 = vsel %vm315, %v312, 0.0
        %317 = vadd.xlane.f32.xlu0 %v316
        %v318 = vpop.xlane.xlu0 %317
        %v319 = vrcp.pop 32.0
        %v320 = vmul.f32 32.0, %v319
        %v321 = vsub.f32 1.0, %v320
        %v322 = vmul.f32 %v319, %v321
        %v323 = vadd.f32 %v319, %v322
        %vm324 = vweird.f32 %v319
        %v325 = vsel %vm324, %v319, %v323
        %v326 = vmul.f32 %v318, %v325
        %v327 = vsub.f32 %v312, %v326
        %v328 = vmul.f32 %v327, %v327
        %v329 = vsel %vm315, %v328, 0.0
        %330 = vadd.xlane.f32.xlu0 %v329
        %v331 = vpop.xlane.xlu0 %330
        %v332 = vmul.f32 %v331, %v325
        %v333 = vadd.f32 %v332, 1e-05
        %v334 = vrsqrt.pop %v333
        %v335 = vmul.f32 %v334, %v333
        %v336 = vmul.f32 %v335, %v334
        %v337 = vmul.f32 0.5, %v336
        %v338 = vsub.f32 1.5, %v337
        %v339 = vmul.f32 %v334, %v338
        %vm340 = vweird.f32 %v333
        %vm341 = vweird.f32 %v334
        %vm342 = vmor %vm340, %vm341
        %v343 = vsel %vm342, %v334, %v339
        %v344 = vmul.f32 %v327, %v343
        %v345 = vperm.slane %v313, 0
        %v346 = vmul.f32 %v344, %v345
        %v347 = vperm.slane %v314, 0
        %v348 = vadd.f32 %v346, %v347
        %v349 = vld [vmem:[%s3] sm:$0xff]
        %v350 = vld [vmem:[%s4] sm:$0x1]
        %v351 = vperm.slane %v350, 0
        %v352 = vlaneseq
        %v353 = vshrl.u32 %v352, 7
        %355 = vset.pattern.permute.xlu0 %v353
        %356 = vperm.xlu0 %355, %v351
        %v357 = vpop.permute.xlu0 %356
        %vm358 = vcmask 64512
        %v360 = vsel %vm358, %v349, 0
        %362 = vmatpush.msra.mxu0 0.0
        %363 = vmatpush.msra.mxu0 0.0
        %364 = vmatpush.msra.mxu0 0.0
        %365 = vmatpush.msra.mxu0 0.0
        %366 = vmatpush.msra.mxu0 0.0
        %367 = vmatpush.msra.mxu0 0.0
        %368 = vmatpush.msra.mxu0 0.0
        %369 = vmatpush.msra.mxu0 0.0
        %370 = vmatpush.msra.mxu0 0.0
        %371 = vmatpush.msra.mxu0 0.0
        %372 = vmatpush.msra.mxu0 0.0
        %373 = vmatpush.msra.mxu0 0.0
        %374 = vmatpush.msra.mxu0 0.0
        %375 = vmatpush.msra.mxu0 0.0
        %376 = vmatpush.msra.mxu0 0.0
        %377 = vmatpush.msra.mxu0 %v348
        %378 = vmatmul.f32.gmra.mxu0 %v360
        %v379 = vpop.f32.mrf.mxu0
        %v380 = vadd.f32 %v357, %v379
        %381 = vdwg.mxu0
        %v382 = vld [vmem:[%s2 + $0x2] sm:$0x1]
        %v383 = vld [vmem:[%s2 + $0x3] sm:$0x1]
        %v384 = vsel %vm315, %v380, 0.0
        %385 = vadd.xlane.f32.xlu0 %v384
        %v386 = vpop.xlane.xlu0 %385
        %v387 = vmul.f32 %v386, %v325
        %v388 = vsub.f32 %v380, %v387
        %v389 = vmul.f32 %v388, %v388
        %v390 = vsel %vm315, %v389, 0.0
        %391 = vadd.xlane.f32.xlu0 %v390
        %v392 = vpop.xlane.xlu0 %391
        %v393 = vmul.f32 %v392, %v325
        %v394 = vadd.f32 %v393, 1e-05
        %v395 = vrsqrt.pop %v394
        %v396 = vmul.f32 %v395, %v394
        %v397 = vmul.f32 %v396, %v395
        %v398 = vmul.f32 0.5, %v397
        %v399 = vsub.f32 1.5, %v398
        %v400 = vmul.f32 %v395, %v399
        %vm401 = vweird.f32 %v394
        %vm402 = vweird.f32 %v395
        %vm403 = vmor %vm401, %vm402
        %v404 = vsel %vm403, %v395, %v400
        %v405 = vmul.f32 %v388, %v404
        %v406 = vperm.slane %v382, 0
        %v407 = vmul.f32 %v405, %v406
        %v408 = vperm.slane %v383, 0
        %v409 = vadd.f32 %v407, %v408
        %410 = vst.msk [vmem:[#allocation2] sm:$0xff] %vm315, %v409
      $region48: #{tpu_custom_call.1} parent=43 // pred_fallthru
        _
      %v411 = vld [vmem:[%s296] sm:$0xff]
      %v412 = vld [vmem:[%s296 + $0x8] sm:$0xff]
      %v413 = vld [vmem:[%s296 + $0x10] sm:$0xff]
      %v414 = vld [vmem:[%s296 + $0x18] sm:$0xff]
      %v415 = vld [vmem:[%s296 + $0x20] sm:$0xff]
      %v416 = vld [vmem:[%s296 + $0x28] sm:$0xff]
      %v417 = vld [vmem:[%s296 + $0x30] sm:$0xff]
      %v418 = vld [vmem:[%s296 + $0x38] sm:$0xff]
      %v419 = vld [vmem:[%s2 + $0x4] sm:$0x1]
      %v420 = vld [vmem:[%s2 + $0x5] sm:$0x1]
      %vm421 = vcmask 261120
      %v422 = vsel %vm421, %v411, 0.0
      %423 = vadd.xlane.f32.xlu0 %v422
      %v424 = vpop.xlane.xlu0 %423
      %v425 = vsel %vm421, %v412, 0.0
      %426 = vadd.xlane.f32.xlu0 %v425
      %v427 = vpop.xlane.xlu0 %426
      %v428 = vsel %vm421, %v413, 0.0
      %429 = vadd.xlane.f32.xlu0 %v428
      %v430 = vpop.xlane.xlu0 %429
      %v431 = vsel %vm421, %v414, 0.0
      %432 = vadd.xlane.f32.xlu0 %v431
      %v433 = vpop.xlane.xlu0 %432
      %v434 = vsel %vm421, %v415, 0.0
      %435 = vadd.xlane.f32.xlu0 %v434
      %v436 = vpop.xlane.xlu0 %435
      %v437 = vsel %vm421, %v416, 0.0
      %438 = vadd.xlane.f32.xlu0 %v437
      %v439 = vpop.xlane.xlu0 %438
      %v440 = vsel %vm421, %v417, 0.0
      %441 = vadd.xlane.f32.xlu0 %v440
      %v442 = vpop.xlane.xlu0 %441
      %v443 = vsel %vm421, %v418, 0.0
      %444 = vadd.xlane.f32.xlu0 %v443
      %v445 = vpop.xlane.xlu0 %444
      %v446 = vrcp.pop 32.0
      %v447 = vmul.f32 32.0, %v446
      %v448 = vsub.f32 1.0, %v447
      %v449 = vmul.f32 %v446, %v448
      %v450 = vadd.f32 %v446, %v449
      %vm451 = vweird.f32 %v446
      %v452 = vsel %vm451, %v446, %v450
      %v453 = vmul.f32 %v424, %v452
      %v454 = vmul.f32 %v427, %v452
      %v455 = vmul.f32 %v430, %v452
      %v456 = vmul.f32 %v433, %v452
      %v457 = vmul.f32 %v436, %v452
      %v458 = vmul.f32 %v439, %v452
      %v459 = vmul.f32 %v442, %v452
      %v460 = vmul.f32 %v445, %v452
      %v461 = vsub.f32 %v411, %v453
      %v462 = vsub.f32 %v412, %v454
      %v463 = vsub.f32 %v413, %v455
      %v464 = vsub.f32 %v414, %v456
      %v465 = vsub.f32 %v415, %v457
      %v466 = vsub.f32 %v416, %v458
      %v467 = vsub.f32 %v417, %v459
      %v468 = vsub.f32 %v418, %v460
      %v469 = vmul.f32 %v461, %v461
      %v470 = vmul.f32 %v462, %v462
      %v471 = vmul.f32 %v463, %v463
      %v472 = vmul.f32 %v464, %v464
      %v473 = vmul.f32 %v465, %v465
      %v474 = vmul.f32 %v466, %v466
      %v475 = vmul.f32 %v467, %v467
      %v476 = vmul.f32 %v468, %v468
      %v477 = vsel %vm421, %v469, 0.0
      %478 = vadd.xlane.f32.xlu0 %v477
      %v479 = vpop.xlane.xlu0 %478
      %v480 = vsel %vm421, %v470, 0.0
      %481 = vadd.xlane.f32.xlu0 %v480
      %v482 = vpop.xlane.xlu0 %481
      %v483 = vsel %vm421, %v471, 0.0
      %484 = vadd.xlane.f32.xlu0 %v483
      %v485 = vpop.xlane.xlu0 %484
      %v486 = vsel %vm421, %v472, 0.0
      %487 = vadd.xlane.f32.xlu0 %v486
      %v488 = vpop.xlane.xlu0 %487
      %v489 = vsel %vm421, %v473, 0.0
      %490 = vadd.xlane.f32.xlu0 %v489
      %v491 = vpop.xlane.xlu0 %490
      %v492 = vsel %vm421, %v474, 0.0
      %493 = vadd.xlane.f32.xlu0 %v492
      %v494 = vpop.xlane.xlu0 %493
      %v495 = vsel %vm421, %v475, 0.0
      %496 = vadd.xlane.f32.xlu0 %v495
      %v497 = vpop.xlane.xlu0 %496
      %v498 = vsel %vm421, %v476, 0.0
      %499 = vadd.xlane.f32.xlu0 %v498
      %v500 = vpop.xlane.xlu0 %499
      %v501 = vmul.f32 %v479, %v452
      %v502 = vmul.f32 %v482, %v452
      %v503 = vmul.f32 %v485, %v452
      %v504 = vmul.f32 %v488, %v452
      %v505 = vmul.f32 %v491, %v452
      %v506 = vmul.f32 %v494, %v452
      %v507 = vmul.f32 %v497, %v452
      %v508 = vmul.f32 %v500, %v452
      %v509 = vadd.f32 %v501, 1e-05
      %v510 = vadd.f32 %v502, 1e-05
      %v511 = vadd.f32 %v503, 1e-05
      %v512 = vadd.f32 %v504, 1e-05
      %v513 = vadd.f32 %v505, 1e-05
      %v514 = vadd.f32 %v506, 1e-05
      %v515 = vadd.f32 %v507, 1e-05
      %v516 = vadd.f32 %v508, 1e-05
      %v517 = vrsqrt.pop %v509
      %v518 = vmul.f32 %v517, %v509
      %v519 = vmul.f32 %v518, %v517
      %v520 = vmul.f32 0.5, %v519
      %v521 = vsub.f32 1.5, %v520
      %v522 = vmul.f32 %v517, %v521
      %vm523 = vweird.f32 %v509
      %vm524 = vweird.f32 %v517
      %vm525 = vmor %vm523, %vm524
      %v526 = vsel %vm525, %v517, %v522
      %v527 = vrsqrt.pop %v510
      %v528 = vmul.f32 %v527, %v510
      %v529 = vmul.f32 %v528, %v527
      %v530 = vmul.f32 0.5, %v529
      %v531 = vsub.f32 1.5, %v530
      %v532 = vmul.f32 %v527, %v531
      %vm533 = vweird.f32 %v510
      %vm534 = vweird.f32 %v527
      %vm535 = vmor %vm533, %vm534
      %v536 = vsel %vm535, %v527, %v532
      %v537 = vrsqrt.pop %v511
      %v538 = vmul.f32 %v537, %v511
      %v539 = vmul.f32 %v538, %v537
      %v540 = vmul.f32 0.5, %v539
      %v541 = vsub.f32 1.5, %v540
      %v542 = vmul.f32 %v537, %v541
      %vm543 = vweird.f32 %v511
      %vm544 = vweird.f32 %v537
      %vm545 = vmor %vm543, %vm544
      %v546 = vsel %vm545, %v537, %v542
      %v547 = vrsqrt.pop %v512
      %v548 = vmul.f32 %v547, %v512
      %v549 = vmul.f32 %v548, %v547
      %v550 = vmul.f32 0.5, %v549
      %v551 = vsub.f32 1.5, %v550
      %v552 = vmul.f32 %v547, %v551
      %vm553 = vweird.f32 %v512
      %vm554 = vweird.f32 %v547
      %vm555 = vmor %vm553, %vm554
      %v556 = vsel %vm555, %v547, %v552
      %v557 = vrsqrt.pop %v513
      %v558 = vmul.f32 %v557, %v513
      %v559 = vmul.f32 %v558, %v557
      %v560 = vmul.f32 0.5, %v559
      %v561 = vsub.f32 1.5, %v560
      %v562 = vmul.f32 %v557, %v561
      %vm563 = vweird.f32 %v513
      %vm564 = vweird.f32 %v557
      %vm565 = vmor %vm563, %vm564
      %v566 = vsel %vm565, %v557, %v562
      %v567 = vrsqrt.pop %v514
      %v568 = vmul.f32 %v567, %v514
      %v569 = vmul.f32 %v568, %v567
      %v570 = vmul.f32 0.5, %v569
      %v571 = vsub.f32 1.5, %v570
      %v572 = vmul.f32 %v567, %v571
      %vm573 = vweird.f32 %v514
      %vm574 = vweird.f32 %v567
      %vm575 = vmor %vm573, %vm574
      %v576 = vsel %vm575, %v567, %v572
      %v577 = vrsqrt.pop %v515
      %v578 = vmul.f32 %v577, %v515
      %v579 = vmul.f32 %v578, %v577
      %v580 = vmul.f32 0.5, %v579
      %v581 = vsub.f32 1.5, %v580
      %v582 = vmul.f32 %v577, %v581
      %vm583 = vweird.f32 %v515
      %vm584 = vweird.f32 %v577
      %vm585 = vmor %vm583, %vm584
      %v586 = vsel %vm585, %v577, %v582
      %v587 = vrsqrt.pop %v516
      %v588 = vmul.f32 %v587, %v516
      %v589 = vmul.f32 %v588, %v587
      %v590 = vmul.f32 0.5, %v589
      %v591 = vsub.f32 1.5, %v590
      %v592 = vmul.f32 %v587, %v591
      %vm593 = vweird.f32 %v516
      %vm594 = vweird.f32 %v587
      %vm595 = vmor %vm593, %vm594
      %v596 = vsel %vm595, %v587, %v592
      %v597 = vmul.f32 %v461, %v526
      %v598 = vmul.f32 %v462, %v536
      %v599 = vmul.f32 %v463, %v546
      %v600 = vmul.f32 %v464, %v556
      %v601 = vmul.f32 %v465, %v566
      %v602 = vmul.f32 %v466, %v576
      %v603 = vmul.f32 %v467, %v586
      %v604 = vmul.f32 %v468, %v596
      %v605 = vperm.slane %v419, 0
      %v606 = vmul.f32 %v597, %v605
      %v607 = vmul.f32 %v598, %v605
      %v608 = vmul.f32 %v599, %v605
      %v609 = vmul.f32 %v600, %v605
      %v610 = vmul.f32 %v601, %v605
      %v611 = vmul.f32 %v602, %v605
      %v612 = vmul.f32 %v603, %v605
      %v613 = vmul.f32 %v604, %v605
      %v614 = vperm.slane %v420, 0
      %v615 = vadd.f32 %v606, %v614
      %v616 = vadd.f32 %v607, %v614
      %v617 = vadd.f32 %v608, %v614
      %v618 = vadd.f32 %v609, %v614
      %v619 = vadd.f32 %v610, %v614
      %v620 = vadd.f32 %v611, %v614
      %v621 = vadd.f32 %v612, %v614
      %v622 = vadd.f32 %v613, %v614
      %v623 = vld [vmem:[%s5] sm:$0xff]
      %v624 = vld [vmem:[%s5 + $0x8] sm:$0xff]
      %v625 = vld [vmem:[%s5 + $0x10] sm:$0xff]
      %v626 = vld [vmem:[%s5 + $0x18] sm:$0xff]
      %v628 = vsel %vm421, %v615, 0
      %v631 = vsel %vm421, %v616, 0
      %v634 = vsel %vm421, %v617, 0
      %v637 = vsel %vm421, %v618, 0
      %v640 = vsel %vm421, %v619, 0
      %v643 = vsel %vm421, %v620, 0
      %v646 = vsel %vm421, %v621, 0
      %v649 = vsel %vm421, %v622, 0
      %651 = vmatpush.msra.mxu0 0.0
      %652 = vmatpush.msra.mxu0 0.0
      %653 = vmatpush.msra.mxu0 0.0
      %654 = vmatpush.msra.mxu0 0.0
      %655 = vmatpush.msra.mxu0 0.0
      %656 = vmatpush.msra.mxu0 0.0
      %657 = vmatpush.msra.mxu0 0.0
      %658 = vmatpush.msra.mxu0 0.0
      %659 = vmatpush.msra.mxu0 0.0
      %660 = vmatpush.msra.mxu0 0.0
      %661 = vmatpush.msra.mxu0 0.0
      %662 = vmatpush.msra.mxu0 0.0
      %663 = vmatpush.msra.mxu0 %v626
      %664 = vmatpush.msra.mxu0 %v625
      %665 = vmatpush.msra.mxu0 %v624
      %666 = vmatpush.msra.mxu0 %v623
      %667 = vmatmul.f32.gmra.mxu0 %v628
      %v668 = vpop.f32.mrf.mxu0
      %v669 = vadd.f32 0.0, %v668
      %670 = vmatmul.f32.gmra.mxu0 %v631
      %v671 = vpop.f32.mrf.mxu0
      %v672 = vadd.f32 0.0, %v671
      %673 = vmatmul.f32.gmra.mxu0 %v634
      %v674 = vpop.f32.mrf.mxu0
      %v675 = vadd.f32 0.0, %v674
      %676 = vmatmul.f32.gmra.mxu0 %v637
      %v677 = vpop.f32.mrf.mxu0
      %v678 = vadd.f32 0.0, %v677
      %679 = vmatmul.f32.gmra.mxu0 %v640
      %v680 = vpop.f32.mrf.mxu0
      %v681 = vadd.f32 0.0, %v680
      %682 = vmatmul.f32.gmra.mxu0 %v643
      %v683 = vpop.f32.mrf.mxu0
      %v684 = vadd.f32 0.0, %v683
      %685 = vmatmul.f32.gmra.mxu0 %v646
      %v686 = vpop.f32.mrf.mxu0
      %v687 = vadd.f32 0.0, %v686
      %688 = vmatmul.f32.gmra.mxu0 %v649
      %v689 = vpop.f32.mrf.mxu0
      %v690 = vadd.f32 0.0, %v689
      %691 = vdwg.mxu0
      %v692 = vxor.u32 %v669, 2147483648
      %v693 = vxor.u32 %v672, 2147483648
      %v694 = vxor.u32 %v675, 2147483648
      %v695 = vxor.u32 %v678, 2147483648
      %v696 = vxor.u32 %v681, 2147483648
      %v697 = vxor.u32 %v684, 2147483648
      %v698 = vxor.u32 %v687, 2147483648
      %v699 = vxor.u32 %v690, 2147483648
      %v700 = vmul.f32 %v692, 1.442695
      %v701 = vpow.pop %v700
      %v702 = vmul.f32 %v693, 1.442695
      %v703 = vpow.pop %v702
      %v704 = vmul.f32 %v694, 1.442695
      %v705 = vpow.pop %v704
      %v706 = vmul.f32 %v695, 1.442695
      %v707 = vpow.pop %v706
      %v708 = vmul.f32 %v696, 1.442695
      %v709 = vpow.pop %v708
      %v710 = vmul.f32 %v697, 1.442695
      %v711 = vpow.pop %v710
      %v712 = vmul.f32 %v698, 1.442695
      %v713 = vpow.pop %v712
      %v714 = vmul.f32 %v699, 1.442695
      %v715 = vpow.pop %v714
      %v716 = vadd.f32 %v701, 1.0
      %v717 = vadd.f32 %v703, 1.0
      %v718 = vadd.f32 %v705, 1.0
      %v719 = vadd.f32 %v707, 1.0
      %v720 = vadd.f32 %v709, 1.0
      %v721 = vadd.f32 %v711, 1.0
      %v722 = vadd.f32 %v713, 1.0
      %v723 = vadd.f32 %v715, 1.0
      %v724 = vrcp.pop %v716
      %v725 = vmul.f32 %v716, %v724
      %v726 = vsub.f32 1.0, %v725
      %v727 = vmul.f32 %v724, %v726
      %v728 = vadd.f32 %v724, %v727
      %vm729 = vweird.f32 %v716
      %vm730 = vweird.f32 %v724
      %vm731 = vmor %vm729, %vm730
      %v732 = vsel %vm731, %v724, %v728
      %v733 = vand.u32 2147483647, %v716
      %vm734 = vcmp.eq.f32.partialorder %v733, 8.507059e+37
      %v735 = vand.u32 %v716, 2147483648
      %v736 = vor.u32 1.1754944e-38, %v735
      %v737 = vsel %vm734, %v736, %v732
      %v738 = vmul.f32 1.0, %v737
      %v739 = vrcp.pop %v717
      %v740 = vmul.f32 %v717, %v739
      %v741 = vsub.f32 1.0, %v740
      %v742 = vmul.f32 %v739, %v741
      %v743 = vadd.f32 %v739, %v742
      %vm744 = vweird.f32 %v717
      %vm745 = vweird.f32 %v739
      %vm746 = vmor %vm744, %vm745
      %v747 = vsel %vm746, %v739, %v743
      %v748 = vand.u32 2147483647, %v717
      %vm749 = vcmp.eq.f32.partialorder %v748, 8.507059e+37
      %v750 = vand.u32 %v717, 2147483648
      %v751 = vor.u32 1.1754944e-38, %v750
      %v752 = vsel %vm749, %v751, %v747
      %v753 = vmul.f32 1.0, %v752
      %v754 = vrcp.pop %v718
      %v755 = vmul.f32 %v718, %v754
      %v756 = vsub.f32 1.0, %v755
      %v757 = vmul.f32 %v754, %v756
      %v758 = vadd.f32 %v754, %v757
      %vm759 = vweird.f32 %v718
      %vm760 = vweird.f32 %v754
      %vm761 = vmor %vm759, %vm760
      %v762 = vsel %vm761, %v754, %v758
      %v763 = vand.u32 2147483647, %v718
      %vm764 = vcmp.eq.f32.partialorder %v763, 8.507059e+37
      %v765 = vand.u32 %v718, 2147483648
      %v766 = vor.u32 1.1754944e-38, %v765
      %v767 = vsel %vm764, %v766, %v762
      %v768 = vmul.f32 1.0, %v767
      %v769 = vrcp.pop %v719
      %v770 = vmul.f32 %v719, %v769
      %v771 = vsub.f32 1.0, %v770
      %v772 = vmul.f32 %v769, %v771
      %v773 = vadd.f32 %v769, %v772
      %vm774 = vweird.f32 %v719
      %vm775 = vweird.f32 %v769
      %vm776 = vmor %vm774, %vm775
      %v777 = vsel %vm776, %v769, %v773
      %v778 = vand.u32 2147483647, %v719
      %vm779 = vcmp.eq.f32.partialorder %v778, 8.507059e+37
      %v780 = vand.u32 %v719, 2147483648
      %v781 = vor.u32 1.1754944e-38, %v780
      %v782 = vsel %vm779, %v781, %v777
      %v783 = vmul.f32 1.0, %v782
      %v784 = vrcp.pop %v720
      %v785 = vmul.f32 %v720, %v784
      %v786 = vsub.f32 1.0, %v785
      %v787 = vmul.f32 %v784, %v786
      %v788 = vadd.f32 %v784, %v787
      %vm789 = vweird.f32 %v720
      %vm790 = vweird.f32 %v784
      %vm791 = vmor %vm789, %vm790
      %v792 = vsel %vm791, %v784, %v788
      %v793 = vand.u32 2147483647, %v720
      %vm794 = vcmp.eq.f32.partialorder %v793, 8.507059e+37
      %v795 = vand.u32 %v720, 2147483648
      %v796 = vor.u32 1.1754944e-38, %v795
      %v797 = vsel %vm794, %v796, %v792
      %v798 = vmul.f32 1.0, %v797
      %v799 = vrcp.pop %v721
      %v800 = vmul.f32 %v721, %v799
      %v801 = vsub.f32 1.0, %v800
      %v802 = vmul.f32 %v799, %v801
      %v803 = vadd.f32 %v799, %v802
      %vm804 = vweird.f32 %v721
      %vm805 = vweird.f32 %v799
      %vm806 = vmor %vm804, %vm805
      %v807 = vsel %vm806, %v799, %v803
      %v808 = vand.u32 2147483647, %v721
      %vm809 = vcmp.eq.f32.partialorder %v808, 8.507059e+37
      %v810 = vand.u32 %v721, 2147483648
      %v811 = vor.u32 1.1754944e-38, %v810
      %v812 = vsel %vm809, %v811, %v807
      %v813 = vmul.f32 1.0, %v812
      %v814 = vrcp.pop %v722
      %v815 = vmul.f32 %v722, %v814
      %v816 = vsub.f32 1.0, %v815
      %v817 = vmul.f32 %v814, %v816
      %v818 = vadd.f32 %v814, %v817
      %vm819 = vweird.f32 %v722
      %vm820 = vweird.f32 %v814
      %vm821 = vmor %vm819, %vm820
      %v822 = vsel %vm821, %v814, %v818
      %v823 = vand.u32 2147483647, %v722
      %vm824 = vcmp.eq.f32.partialorder %v823, 8.507059e+37
      %v825 = vand.u32 %v722, 2147483648
      %v826 = vor.u32 1.1754944e-38, %v825
      %v827 = vsel %vm824, %v826, %v822
      %v828 = vmul.f32 1.0, %v827
      %v829 = vrcp.pop %v723
      %v830 = vmul.f32 %v723, %v829
      %v831 = vsub.f32 1.0, %v830
      %v832 = vmul.f32 %v829, %v831
      %v833 = vadd.f32 %v829, %v832
      %vm834 = vweird.f32 %v723
      %vm835 = vweird.f32 %v829
      %vm836 = vmor %vm834, %vm835
      %v837 = vsel %vm836, %v829, %v833
      %v838 = vand.u32 2147483647, %v723
      %vm839 = vcmp.eq.f32.partialorder %v838, 8.507059e+37
      %v840 = vand.u32 %v723, 2147483648
      %v841 = vor.u32 1.1754944e-38, %v840
      %v842 = vsel %vm839, %v841, %v837
      %v843 = vmul.f32 1.0, %v842
      %v844 = vld [vmem:[#allocation2] sm:$0xff]
      %846 = vset.pattern.permute.xlu0 0
      %847 = vperm.xlu0 %846, %v738
      %v848 = vpop.permute.xlu0 %847
      %851 = vset.pattern.permute.xlu0 0
      %852 = vperm.xlu0 %851, %v753
      %v853 = vpop.permute.xlu0 %852
      %856 = vset.pattern.permute.xlu0 0
      %857 = vperm.xlu0 %856, %v768
      %v858 = vpop.permute.xlu0 %857
      %861 = vset.pattern.permute.xlu0 0
      %862 = vperm.xlu0 %861, %v783
      %v863 = vpop.permute.xlu0 %862
      %866 = vset.pattern.permute.xlu0 0
      %867 = vperm.xlu0 %866, %v798
      %v868 = vpop.permute.xlu0 %867
      %871 = vset.pattern.permute.xlu0 0
      %872 = vperm.xlu0 %871, %v813
      %v873 = vpop.permute.xlu0 %872
      %876 = vset.pattern.permute.xlu0 0
      %877 = vperm.xlu0 %876, %v828
      %v878 = vpop.permute.xlu0 %877
      %881 = vset.pattern.permute.xlu0 0
      %882 = vperm.xlu0 %881, %v843
      %v883 = vpop.permute.xlu0 %882
      %v885 = vperm.slane %v844, 0
      %v886 = vmul.f32 %v848, %v885
      %v887 = vmul.f32 %v853, %v885
      %v888 = vmul.f32 %v858, %v885
      %v889 = vmul.f32 %v863, %v885
      %v890 = vmul.f32 %v868, %v885
      %v891 = vmul.f32 %v873, %v885
      %v892 = vmul.f32 %v878, %v885
      %v893 = vmul.f32 %v883, %v885
      %v894 = vadd.f32 %v411, %v886
      %v895 = vadd.f32 %v412, %v887
      %v896 = vadd.f32 %v413, %v888
      %v897 = vadd.f32 %v414, %v889
      %v898 = vadd.f32 %v415, %v890
      %v899 = vadd.f32 %v416, %v891
      %v900 = vadd.f32 %v417, %v892
      %v901 = vadd.f32 %v418, %v893
      %902 = vset.pattern.permute.xlu0 1
      %903 = vperm.xlu0 %902, %v738
      %v904 = vpop.permute.xlu0 %903
      %906 = vset.pattern.permute.xlu0 1
      %907 = vperm.xlu0 %906, %v753
      %v908 = vpop.permute.xlu0 %907
      %910 = vset.pattern.permute.xlu0 1
      %911 = vperm.xlu0 %910, %v768
      %v912 = vpop.permute.xlu0 %911
      %914 = vset.pattern.permute.xlu0 1
      %915 = vperm.xlu0 %914, %v783
      %v916 = vpop.permute.xlu0 %915
      %918 = vset.pattern.permute.xlu0 1
      %919 = vperm.xlu0 %918, %v798
      %v920 = vpop.permute.xlu0 %919
      %922 = vset.pattern.permute.xlu0 1
      %923 = vperm.xlu0 %922, %v813
      %v924 = vpop.permute.xlu0 %923
      %926 = vset.pattern.permute.xlu0 1
      %927 = vperm.xlu0 %926, %v828
      %v928 = vpop.permute.xlu0 %927
      %930 = vset.pattern.permute.xlu0 1
      %931 = vperm.xlu0 %930, %v843
      %v932 = vpop.permute.xlu0 %931
      %v934 = vperm.slane %v844, 1
      %v935 = vmul.f32 %v904, %v934
      %v936 = vmul.f32 %v908, %v934
      %v937 = vmul.f32 %v912, %v934
      %v938 = vmul.f32 %v916, %v934
      %v939 = vmul.f32 %v920, %v934
      %v940 = vmul.f32 %v924, %v934
      %v941 = vmul.f32 %v928, %v934
      %v942 = vmul.f32 %v932, %v934
      %v943 = vadd.f32 %v894, %v935
      %v944 = vadd.f32 %v895, %v936
      %v945 = vadd.f32 %v896, %v937
      %v946 = vadd.f32 %v897, %v938
      %v947 = vadd.f32 %v898, %v939
      %v948 = vadd.f32 %v899, %v940
      %v949 = vadd.f32 %v900, %v941
      %v950 = vadd.f32 %v901, %v942
      %951 = vset.pattern.permute.xlu0 2
      %952 = vperm.xlu0 %951, %v738
      %v953 = vpop.permute.xlu0 %952
      %955 = vset.pattern.permute.xlu0 2
      %956 = vperm.xlu0 %955, %v753
      %v957 = vpop.permute.xlu0 %956
      %959 = vset.pattern.permute.xlu0 2
      %960 = vperm.xlu0 %959, %v768
      %v961 = vpop.permute.xlu0 %960
      %963 = vset.pattern.permute.xlu0 2
      %964 = vperm.xlu0 %963, %v783
      %v965 = vpop.permute.xlu0 %964
      %967 = vset.pattern.permute.xlu0 2
      %968 = vperm.xlu0 %967, %v798
      %v969 = vpop.permute.xlu0 %968
      %971 = vset.pattern.permute.xlu0 2
      %972 = vperm.xlu0 %971, %v813
      %v973 = vpop.permute.xlu0 %972
      %975 = vset.pattern.permute.xlu0 2
      %976 = vperm.xlu0 %975, %v828
      %v977 = vpop.permute.xlu0 %976
      %979 = vset.pattern.permute.xlu0 2
      %980 = vperm.xlu0 %979, %v843
      %v981 = vpop.permute.xlu0 %980
      %v983 = vperm.slane %v844, 2
      %v984 = vmul.f32 %v953, %v983
      %v985 = vmul.f32 %v957, %v983
      %v986 = vmul.f32 %v961, %v983
      %v987 = vmul.f32 %v965, %v983
      %v988 = vmul.f32 %v969, %v983
      %v989 = vmul.f32 %v973, %v983
      %v990 = vmul.f32 %v977, %v983
      %v991 = vmul.f32 %v981, %v983
      %v992 = vadd.f32 %v943, %v984
      %v993 = vadd.f32 %v944, %v985
      %v994 = vadd.f32 %v945, %v986
      %v995 = vadd.f32 %v946, %v987
      %v996 = vadd.f32 %v947, %v988
      %v997 = vadd.f32 %v948, %v989
      %v998 = vadd.f32 %v949, %v990
      %v999 = vadd.f32 %v950, %v991
      %1000 = vset.pattern.permute.xlu0 3
      %1001 = vperm.xlu0 %1000, %v738
      %v1002 = vpop.permute.xlu0 %1001
      %1004 = vset.pattern.permute.xlu0 3
      %1005 = vperm.xlu0 %1004, %v753
      %v1006 = vpop.permute.xlu0 %1005
      %1008 = vset.pattern.permute.xlu0 3
      %1009 = vperm.xlu0 %1008, %v768
      %v1010 = vpop.permute.xlu0 %1009
      %1012 = vset.pattern.permute.xlu0 3
      %1013 = vperm.xlu0 %1012, %v783
      %v1014 = vpop.permute.xlu0 %1013
      %1016 = vset.pattern.permute.xlu0 3
      %1017 = vperm.xlu0 %1016, %v798
      %v1018 = vpop.permute.xlu0 %1017
      %1020 = vset.pattern.permute.xlu0 3
      %1021 = vperm.xlu0 %1020, %v813
      %v1022 = vpop.permute.xlu0 %1021
      %1024 = vset.pattern.permute.xlu0 3
      %1025 = vperm.xlu0 %1024, %v828
      %v1026 = vpop.permute.xlu0 %1025
      %1028 = vset.pattern.permute.xlu0 3
      %1029 = vperm.xlu0 %1028, %v843
      %v1030 = vpop.permute.xlu0 %1029
      %v1032 = vperm.slane %v844, 3
      %v1033 = vmul.f32 %v1002, %v1032
      %v1034 = vmul.f32 %v1006, %v1032
      %v1035 = vmul.f32 %v1010, %v1032
      %v1036 = vmul.f32 %v1014, %v1032
      %v1037 = vmul.f32 %v1018, %v1032
      %v1038 = vmul.f32 %v1022, %v1032
      %v1039 = vmul.f32 %v1026, %v1032
      %v1040 = vmul.f32 %v1030, %v1032
      %v1041 = vadd.f32 %v992, %v1033
      %v1042 = vadd.f32 %v993, %v1034
      %v1043 = vadd.f32 %v994, %v1035
      %v1044 = vadd.f32 %v995, %v1036
      %v1045 = vadd.f32 %v996, %v1037
      %v1046 = vadd.f32 %v997, %v1038
      %v1047 = vadd.f32 %v998, %v1039
      %v1048 = vadd.f32 %v999, %v1040
      %1049 = vset.pattern.permute.xlu0 4
      %1050 = vperm.xlu0 %1049, %v738
      %v1051 = vpop.permute.xlu0 %1050
      %1053 = vset.pattern.permute.xlu0 4
      %1054 = vperm.xlu0 %1053, %v753
      %v1055 = vpop.permute.xlu0 %1054
      %1057 = vset.pattern.permute.xlu0 4
      %1058 = vperm.xlu0 %1057, %v768
      %v1059 = vpop.permute.xlu0 %1058
      %1061 = vset.pattern.permute.xlu0 4
      %1062 = vperm.xlu0 %1061, %v783
      %v1063 = vpop.permute.xlu0 %1062
      %1065 = vset.pattern.permute.xlu0 4
      %1066 = vperm.xlu0 %1065, %v798
      %v1067 = vpop.permute.xlu0 %1066
      %1069 = vset.pattern.permute.xlu0 4
      %1070 = vperm.xlu0 %1069, %v813
      %v1071 = vpop.permute.xlu0 %1070
      %1073 = vset.pattern.permute.xlu0 4
      %1074 = vperm.xlu0 %1073, %v828
      %v1075 = vpop.permute.xlu0 %1074
      %1077 = vset.pattern.permute.xlu0 4
      %1078 = vperm.xlu0 %1077, %v843
      %v1079 = vpop.permute.xlu0 %1078
      %v1081 = vperm.slane %v844, 4
      %v1082 = vmul.f32 %v1051, %v1081
      %v1083 = vmul.f32 %v1055, %v1081
      %v1084 = vmul.f32 %v1059, %v1081
      %v1085 = vmul.f32 %v1063, %v1081
      %v1086 = vmul.f32 %v1067, %v1081
      %v1087 = vmul.f32 %v1071, %v1081
      %v1088 = vmul.f32 %v1075, %v1081
      %v1089 = vmul.f32 %v1079, %v1081
      %v1090 = vadd.f32 %v1041, %v1082
      %v1091 = vadd.f32 %v1042, %v1083
      %v1092 = vadd.f32 %v1043, %v1084
      %v1093 = vadd.f32 %v1044, %v1085
      %v1094 = vadd.f32 %v1045, %v1086
      %v1095 = vadd.f32 %v1046, %v1087
      %v1096 = vadd.f32 %v1047, %v1088
      %v1097 = vadd.f32 %v1048, %v1089
      %1098 = vset.pattern.permute.xlu0 5
      %1099 = vperm.xlu0 %1098, %v738
      %v1100 = vpop.permute.xlu0 %1099
      %1102 = vset.pattern.permute.xlu0 5
      %1103 = vperm.xlu0 %1102, %v753
      %v1104 = vpop.permute.xlu0 %1103
      %1106 = vset.pattern.permute.xlu0 5
      %1107 = vperm.xlu0 %1106, %v768
      %v1108 = vpop.permute.xlu0 %1107
      %1110 = vset.pattern.permute.xlu0 5
      %1111 = vperm.xlu0 %1110, %v783
      %v1112 = vpop.permute.xlu0 %1111
      %1114 = vset.pattern.permute.xlu0 5
      %1115 = vperm.xlu0 %1114, %v798
      %v1116 = vpop.permute.xlu0 %1115
      %1118 = vset.pattern.permute.xlu0 5
      %1119 = vperm.xlu0 %1118, %v813
      %v1120 = vpop.permute.xlu0 %1119
      %1122 = vset.pattern.permute.xlu0 5
      %1123 = vperm.xlu0 %1122, %v828
      %v1124 = vpop.permute.xlu0 %1123
      %1126 = vset.pattern.permute.xlu0 5
      %1127 = vperm.xlu0 %1126, %v843
      %v1128 = vpop.permute.xlu0 %1127
      %v1130 = vperm.slane %v844, 5
      %v1131 = vmul.f32 %v1100, %v1130
      %v1132 = vmul.f32 %v1104, %v1130
      %v1133 = vmul.f32 %v1108, %v1130
      %v1134 = vmul.f32 %v1112, %v1130
      %v1135 = vmul.f32 %v1116, %v1130
      %v1136 = vmul.f32 %v1120, %v1130
      %v1137 = vmul.f32 %v1124, %v1130
      %v1138 = vmul.f32 %v1128, %v1130
      %v1139 = vadd.f32 %v1090, %v1131
      %v1140 = vadd.f32 %v1091, %v1132
      %v1141 = vadd.f32 %v1092, %v1133
      %v1142 = vadd.f32 %v1093, %v1134
      %v1143 = vadd.f32 %v1094, %v1135
      %v1144 = vadd.f32 %v1095, %v1136
      %v1145 = vadd.f32 %v1096, %v1137
      %v1146 = vadd.f32 %v1097, %v1138
      %1147 = vset.pattern.permute.xlu0 6
      %1148 = vperm.xlu0 %1147, %v738
      %v1149 = vpop.permute.xlu0 %1148
      %1151 = vset.pattern.permute.xlu0 6
      %1152 = vperm.xlu0 %1151, %v753
      %v1153 = vpop.permute.xlu0 %1152
      %1155 = vset.pattern.permute.xlu0 6
      %1156 = vperm.xlu0 %1155, %v768
      %v1157 = vpop.permute.xlu0 %1156
      %1159 = vset.pattern.permute.xlu0 6
      %1160 = vperm.xlu0 %1159, %v783
      %v1161 = vpop.permute.xlu0 %1160
      %1163 = vset.pattern.permute.xlu0 6
      %1164 = vperm.xlu0 %1163, %v798
      %v1165 = vpop.permute.xlu0 %1164
      %1167 = vset.pattern.permute.xlu0 6
      %1168 = vperm.xlu0 %1167, %v813
      %v1169 = vpop.permute.xlu0 %1168
      %1171 = vset.pattern.permute.xlu0 6
      %1172 = vperm.xlu0 %1171, %v828
      %v1173 = vpop.permute.xlu0 %1172
      %1175 = vset.pattern.permute.xlu0 6
      %1176 = vperm.xlu0 %1175, %v843
      %v1177 = vpop.permute.xlu0 %1176
      %v1179 = vperm.slane %v844, 6
      %v1180 = vmul.f32 %v1149, %v1179
      %v1181 = vmul.f32 %v1153, %v1179
      %v1182 = vmul.f32 %v1157, %v1179
      %v1183 = vmul.f32 %v1161, %v1179
      %v1184 = vmul.f32 %v1165, %v1179
      %v1185 = vmul.f32 %v1169, %v1179
      %v1186 = vmul.f32 %v1173, %v1179
      %v1187 = vmul.f32 %v1177, %v1179
      %v1188 = vadd.f32 %v1139, %v1180
      %v1189 = vadd.f32 %v1140, %v1181
      %v1190 = vadd.f32 %v1141, %v1182
      %v1191 = vadd.f32 %v1142, %v1183
      %v1192 = vadd.f32 %v1143, %v1184
      %v1193 = vadd.f32 %v1144, %v1185
      %v1194 = vadd.f32 %v1145, %v1186
      %v1195 = vadd.f32 %v1146, %v1187
      %1196 = vset.pattern.permute.xlu0 7
      %1197 = vperm.xlu0 %1196, %v738
      %v1198 = vpop.permute.xlu0 %1197
      %1200 = vset.pattern.permute.xlu0 7
      %1201 = vperm.xlu0 %1200, %v753
      %v1202 = vpop.permute.xlu0 %1201
      %1204 = vset.pattern.permute.xlu0 7
      %1205 = vperm.xlu0 %1204, %v768
      %v1206 = vpop.permute.xlu0 %1205
      %1208 = vset.pattern.permute.xlu0 7
      %1209 = vperm.xlu0 %1208, %v783
      %v1210 = vpop.permute.xlu0 %1209
      %1212 = vset.pattern.permute.xlu0 7
      %1213 = vperm.xlu0 %1212, %v798
      %v1214 = vpop.permute.xlu0 %1213
      %1216 = vset.pattern.permute.xlu0 7
      %1217 = vperm.xlu0 %1216, %v813
      %v1218 = vpop.permute.xlu0 %1217
      %1220 = vset.pattern.permute.xlu0 7
      %1221 = vperm.xlu0 %1220, %v828
      %v1222 = vpop.permute.xlu0 %1221
      %1224 = vset.pattern.permute.xlu0 7
      %1225 = vperm.xlu0 %1224, %v843
      %v1226 = vpop.permute.xlu0 %1225
      %v1228 = vperm.slane %v844, 7
      %v1229 = vmul.f32 %v1198, %v1228
      %v1230 = vmul.f32 %v1202, %v1228
      %v1231 = vmul.f32 %v1206, %v1228
      %v1232 = vmul.f32 %v1210, %v1228
      %v1233 = vmul.f32 %v1214, %v1228
      %v1234 = vmul.f32 %v1218, %v1228
      %v1235 = vmul.f32 %v1222, %v1228
      %v1236 = vmul.f32 %v1226, %v1228
      %v1237 = vadd.f32 %v1188, %v1229
      %v1238 = vadd.f32 %v1189, %v1230
      %v1239 = vadd.f32 %v1190, %v1231
      %v1240 = vadd.f32 %v1191, %v1232
      %v1241 = vadd.f32 %v1192, %v1233
      %v1242 = vadd.f32 %v1193, %v1234
      %v1243 = vadd.f32 %v1194, %v1235
      %v1244 = vadd.f32 %v1195, %v1236
      %1245 = vst.msk [vmem:[%s306] sm:$0xff] %vm421, %v1237
      %1246 = vst.msk [vmem:[%s306 + $0x8] sm:$0xff] %vm421, %v1238
      %1247 = vst.msk [vmem:[%s306 + $0x10] sm:$0xff] %vm421, %v1239
      %1248 = vst.msk [vmem:[%s306 + $0x18] sm:$0xff] %vm421, %v1240
      %1249 = vst.msk [vmem:[%s306 + $0x20] sm:$0xff] %vm421, %v1241
      %1250 = vst.msk [vmem:[%s306 + $0x28] sm:$0xff] %vm421, %v1242
      %1251 = vst.msk [vmem:[%s306 + $0x30] sm:$0xff] %vm421, %v1243
      %1252 = vst.msk [vmem:[%s306 + $0x38] sm:$0xff] %vm421, %v1244
      %s1253 = smul.u32 8, %s22
      %p1254 = scmp.lt.s32.totalorder %s21, 1
      %s1255 = scalar_select %p1254, %s21, 1
      %p1256 = scmp.lt.s32.totalorder %s1253, 7
      %s1257 = scalar_select %p1256, %s1253, 7
      %s1258 = smul.addr %s1255, 8
      %s1259 = sadd.s32 %s1257, %s1258
      %s1260 = smul.addr %s1259, 8
      %s1261 = scalar_lea.vmem %s6, %s1260
      // Predicated region
      $region49: #{tpu_custom_call.1} parent=43 // pred_check
        %p1262 = pneg %p187
      $region50: #{tpu_custom_call.1} parent=43 // pred_check_branch
        %1264 = sbr.rel (%p1262) target = $region52
      $region51: #{tpu_custom_call.1} parent=43 // pred_region
        %s1265 = smul.u32 8, %s22
      $region52: #{tpu_custom_call.1} parent=43 // pred_fallthru
        _
    $region44: #{tpu_custom_call.1} parent=5 // pred_fallthru
      _
    %p1266 = scmp.le.s32.totalorder 2, %s12
    // Predicated region
    $region53: #{tpu_custom_call.1} parent=5 // pred_check
      %p1267 = pneg %p1266
    $region54: #{tpu_custom_call.1} parent=5 // pred_check_branch
      %1269 = sbr.rel (%p1267) target = $region56
    $region55: #{tpu_custom_call.1} parent=5 // pred_region
      %s1270 = ssub.s32 %s12, 2
      // Predicated region
      $region57: #{tpu_custom_call.1} parent=55 // pred_check
        %p1271 = pneg %p193
      $region58: #{tpu_custom_call.1} parent=55 // pred_check_branch
        %1273 = sbr.rel (%p1271) target = $region60
      $region59: #{tpu_custom_call.1} parent=55 // pred_region
        %s1274 = smul.u32 8, %s24
        %p1275 = scmp.lt.s32.totalorder %s23, 1
        %s1276 = scalar_select %p1275, %s23, 1
        %p1277 = scmp.lt.s32.totalorder %s1274, 7
        %s1278 = scalar_select %p1277, %s1274, 7
        %s1279 = smul.addr %s1276, 8
        %s1280 = sadd.s32 %s1278, %s1279
        %s1281 = smul.addr %s1280, 8
        %s1282 = scalar_lea.vmem %s6, %s1281
      $region60: #{tpu_custom_call.1} parent=55 // pred_fallthru
        _
    $region56: #{tpu_custom_call.1} parent=5 // pred_fallthru
      _
  $region6: #{tpu_custom_call.1} parent=0 // loop_footer
    %s16 = sadd.s32 1, %s12
  $region7: #{tpu_custom_call.1} parent=0 // loop_footer_branch
    %11 = sbr.rel target = $region3
  $region8: #{tpu_custom_call.1} parent=0 // loop_exit
    _

</llo_original>
